<compile_context>
chip_gen: v6e
topology: v6e:2x2x1
jax: 0.10.0
libtpu: 0.0.40
codegen_flags: <defaults>
</compile_context>

<pallas_src>
import functools

import jax
import jax.numpy as jnp
from jax.experimental import pallas as pl
from jax.experimental.pallas import tpu as pltpu


def _mix32(x):
    # splitmix32-style avalanche on uint32 lanes (pure VPU ops; portable).
    x = x ^ (x >> 16)
    x = x * jnp.uint32(0x7FEB352D)
    x = x ^ (x >> 15)
    x = x * jnp.uint32(0x846CA68B)
    x = x ^ (x >> 16)
    return x


def _multi_dropout_kernel(seed_ref, x_ref, o_ref, *, drop_rates, block_rows, cols):
    """One grid step processes a (block_rows, cols) tile.

    seed_ref : SMEM int32[1]
    x_ref    : VMEM [block_rows, cols] (native dtype)
    o_ref    : VMEM [block_rows, cols] (native dtype)
    """
    x = x_ref[...].astype(jnp.float32)
    n = float(len(drop_rates))

    # Global element index of every lane in this tile -> masks are independent
    # across tiles without per-tile reseeding.
    pid = pl.program_id(0)
    base_row = (pid * block_rows).astype(jnp.uint32)
    row_ids = jax.lax.broadcasted_iota(jnp.int32, (block_rows, cols), 0).astype(jnp.uint32)
    lane_ids = jax.lax.broadcasted_iota(jnp.int32, (block_rows, cols), 1).astype(jnp.uint32)
    elem_idx = (base_row + row_ids) * jnp.uint32(cols) + lane_ids

    seed_mix = seed_ref[0].astype(jnp.uint32) * jnp.uint32(0x9E3779B9)

    # Accumulate a keep-weighted scale; multiply by x once at the end.
    acc_scale = jnp.zeros((block_rows, cols), jnp.float32)
    for r_idx, rate in enumerate(drop_rates):
        rate = float(rate)
        if rate >= 1.0:
            # F.dropout with p=1 zeroes everything -> zero contribution.
            continue
        if rate <= 0.0:
            # Identity dropout -> contributes x / n.
            acc_scale = acc_scale + jnp.float32(1.0 / n)
            continue
        salt = jnp.uint32(((r_idx + 1) * 0x85EBCA6B) & 0xFFFFFFFF)
        bits = _mix32(_mix32(elem_idx ^ seed_mix ^ salt))
        # keep with prob (1 - rate): P(bits >= rate * 2^32) = 1 - rate
        threshold = jnp.uint32(min(int(round(rate * 4294967296.0)), 4294967295))
        scale = jnp.float32(1.0 / ((1.0 - rate) * n))
        acc_scale = acc_scale + jnp.where(bits >= threshold, scale, jnp.float32(0.0))

    o_ref[...] = (x * acc_scale).astype(o_ref.dtype)


def multi_dropout(x, drop_rates, *, training=True, seed=1234, cols=None, block_rows=None):
    """Pallas implementation of MultiDropout.forward (elementwise, any shape)."""
    if not training:
        # Every dropout is identity in eval mode; the average is x itself.
        return x

    drop_rates = tuple(float(r) for r in drop_rates)
    orig_shape = x.shape
    n_elem = int(x.size)

    # Lane-dense 2-D layout: wide last dim for fat DMA bursts / unmasked stores.
    if cols is None:
        cols = 1024 if n_elem >= 8 * 1024 else 128
    rows = -(-n_elem // cols)
    rows = ((rows + 7) // 8) * 8                       # sublane multiple
    if block_rows is None:
        block_rows = min(512, rows)                    # <= 2 MiB f32 per buffer
    block_rows = max(8, (min(block_rows, rows) // 8) * 8)
    rows = ((rows + block_rows - 1) // block_rows) * block_rows
    padded = rows * cols

    flat = x.reshape(-1)
    if padded != n_elem:                               # pad only when needed
        flat = jnp.pad(flat, (0, padded - n_elem))
    x2d = flat.reshape(rows, cols)

    seed_arr = jnp.asarray([seed], dtype=jnp.int32)
    kernel = functools.partial(
        _multi_dropout_kernel,
        drop_rates=drop_rates,
        block_rows=block_rows,
        cols=cols,
    )

    out2d = pl.pallas_call(
        kernel,
        grid=(rows // block_rows,),
        out_shape=jax.ShapeDtypeStruct((rows, cols), x.dtype),
        in_specs=[
            pl.BlockSpec(memory_space=pltpu.SMEM),               # seed scalar
            pl.BlockSpec((block_rows, cols), lambda i: (i, 0)),  # input tile
        ],
        out_specs=pl.BlockSpec((block_rows, cols), lambda i: (i, 0)),
        compiler_params=pltpu.CompilerParams(
            dimension_semantics=("parallel",),
        ),
    )(seed_arr, x2d)

    out = out2d.reshape(-1)
    if padded != n_elem:
        out = out[:n_elem]
    return out.reshape(orig_shape)


if __name__ == "__main__":
    key = jax.random.PRNGKey(0)
    # NCHW activations, matching the conv-feature inputs this module sees.
    x = jax.random.normal(key, (2, 4, 16, 16), dtype=jnp.float32)
    drop_rates = (0.1, 0.3, 0.5)

    # Training-mode forward (stochastic, deterministic given the seed).
    y_train = jax.block_until_ready(multi_dropout(x, drop_rates, training=True, seed=1234))
    assert y_train.shape == x.shape and y_train.dtype == x.dtype
    assert bool(jnp.isfinite(y_train).all())

    # Eval-mode forward must equal the input exactly.
    y_eval = jax.block_until_ready(multi_dropout(x, drop_rates, training=False))
    assert jnp.array_equal(y_eval, x)

    # Deterministic check of kernel + tiling math: a single p=0 dropout is an
    # exact identity, exercised on a multi-block grid (block_rows=8 -> grid=2).
    y_id = jax.block_until_ready(
        multi_dropout(x, (0.0,), training=True, seed=7, cols=128, block_rows=8))
    assert jnp.allclose(y_id, x)

    # Multi-block stochastic path also runs cleanly.
    y_tiled = jax.block_until_ready(
        multi_dropout(x, drop_rates, training=True, seed=1234, cols=128, block_rows=8))
    assert bool(jnp.isfinite(y_tiled).all())

    print("KERNEL_OK")
</pallas_src>

<mosaic_0001>
module attributes {stable_mosaic.version = 11 : i64} {
  func.func @_multi_dropout_kernel(%arg0: i32, %arg1: memref<1xi32, #tpu.memory_space<smem>>, %arg2: memref<16x128xf32, #tpu.memory_space<vmem>>, %arg3: memref<16x128xf32, #tpu.memory_space<vmem>>) attributes {dimension_semantics = [#tpu.dimension_semantics<parallel>], iteration_bounds = array<i64: 1>, scalar_prefetch = 0 : i64, scratch_operands = 0 : i64, tpu.core_type = #tpu.core_type<tc>, window_params = [{transform_indices = @transform_0, window_bounds = array<i64: 1>}, {transform_indices = @transform_1, window_bounds = array<i64: 16, 128>}, {transform_indices = @transform_2, window_bounds = array<i64: 16, 128>}]} {
    %c0 = arith.constant 0 : index
    %c0_0 = arith.constant 0 : index
    %0 = vector.load %arg2[%c0, %c0_0] : memref<16x128xf32, #tpu.memory_space<vmem>>, vector<16x128xf32>
    %c16_i32 = arith.constant 16 : i32
    %1 = arith.muli %arg0, %c16_i32 : i32
    %2 = tpu.iota {dimensions = array<i32: 0>} : vector<16x128xi32>
    %3 = tpu.iota {dimensions = array<i32: 1>} : vector<16x128xi32>
    %4 = vector.broadcast %1 : i32 to vector<16x128xi32>
    %5 = arith.addi %4, %2 : vector<16x128xi32>
    %c128_i32 = arith.constant 128 : i32
    %6 = vector.broadcast %c128_i32 : i32 to vector<16x128xi32>
    %7 = arith.muli %5, %6 : vector<16x128xi32>
    %8 = arith.addi %7, %3 : vector<16x128xi32>
    %c0_1 = arith.constant 0 : index
    %9 = memref.load %arg1[%c0_1] : memref<1xi32, #tpu.memory_space<smem>>
    %c-1640531527_i32 = arith.constant -1640531527 : i32
    %10 = arith.muli %9, %c-1640531527_i32 : i32
    %cst = arith.constant 0.000000e+00 : f32
    %11 = vector.broadcast %cst : f32 to vector<16x128xf32>
    %12 = vector.broadcast %10 : i32 to vector<16x128xi32>
    %13 = arith.xori %8, %12 : vector<16x128xi32>
    %c-2048144789_i32 = arith.constant -2048144789 : i32
    %14 = vector.broadcast %c-2048144789_i32 : i32 to vector<16x128xi32>
    %15 = arith.xori %13, %14 : vector<16x128xi32>
    %c16_i32_2 = arith.constant 16 : i32
    %16 = vector.broadcast %c16_i32_2 : i32 to vector<16x128xi32>
    %17 = arith.shrui %15, %16 : vector<16x128xi32>
    %18 = arith.xori %15, %17 : vector<16x128xi32>
    %c2146121005_i32 = arith.constant 2146121005 : i32
    %19 = vector.broadcast %c2146121005_i32 : i32 to vector<16x128xi32>
    %20 = arith.muli %18, %19 : vector<16x128xi32>
    %c15_i32 = arith.constant 15 : i32
    %21 = vector.broadcast %c15_i32 : i32 to vector<16x128xi32>
    %22 = arith.shrui %20, %21 : vector<16x128xi32>
    %23 = arith.xori %20, %22 : vector<16x128xi32>
    %c-2073254261_i32 = arith.constant -2073254261 : i32
    %24 = vector.broadcast %c-2073254261_i32 : i32 to vector<16x128xi32>
    %25 = arith.muli %23, %24 : vector<16x128xi32>
    %c16_i32_3 = arith.constant 16 : i32
    %26 = vector.broadcast %c16_i32_3 : i32 to vector<16x128xi32>
    %27 = arith.shrui %25, %26 : vector<16x128xi32>
    %28 = arith.xori %25, %27 : vector<16x128xi32>
    %c16_i32_4 = arith.constant 16 : i32
    %29 = vector.broadcast %c16_i32_4 : i32 to vector<16x128xi32>
    %30 = arith.shrui %28, %29 : vector<16x128xi32>
    %31 = arith.xori %28, %30 : vector<16x128xi32>
    %c2146121005_i32_5 = arith.constant 2146121005 : i32
    %32 = vector.broadcast %c2146121005_i32_5 : i32 to vector<16x128xi32>
    %33 = arith.muli %31, %32 : vector<16x128xi32>
    %c15_i32_6 = arith.constant 15 : i32
    %34 = vector.broadcast %c15_i32_6 : i32 to vector<16x128xi32>
    %35 = arith.shrui %33, %34 : vector<16x128xi32>
    %36 = arith.xori %33, %35 : vector<16x128xi32>
    %c-2073254261_i32_7 = arith.constant -2073254261 : i32
    %37 = vector.broadcast %c-2073254261_i32_7 : i32 to vector<16x128xi32>
    %38 = arith.muli %36, %37 : vector<16x128xi32>
    %c16_i32_8 = arith.constant 16 : i32
    %39 = vector.broadcast %c16_i32_8 : i32 to vector<16x128xi32>
    %40 = arith.shrui %38, %39 : vector<16x128xi32>
    %41 = arith.xori %38, %40 : vector<16x128xi32>
    %c429496730_i32 = arith.constant 429496730 : i32
    %42 = vector.broadcast %c429496730_i32 : i32 to vector<16x128xi32>
    %43 = arith.cmpi uge, %41, %42 : vector<16x128xi32>
    %cst_9 = arith.constant 0.370370358 : f32
    %cst_10 = arith.constant 0.000000e+00 : f32
    %44 = vector.broadcast %cst_9 : f32 to vector<16x128xf32>
    %45 = vector.broadcast %cst_10 : f32 to vector<16x128xf32>
    %46 = arith.select %43, %44, %45 : vector<16x128xi1>, vector<16x128xf32>
    %47 = arith.addf %11, %46 : vector<16x128xf32>
    %48 = vector.broadcast %10 : i32 to vector<16x128xi32>
    %49 = arith.xori %8, %48 : vector<16x128xi32>
    %c198677718_i32 = arith.constant 198677718 : i32
    %50 = vector.broadcast %c198677718_i32 : i32 to vector<16x128xi32>
    %51 = arith.xori %49, %50 : vector<16x128xi32>
    %c16_i32_11 = arith.constant 16 : i32
    %52 = vector.broadcast %c16_i32_11 : i32 to vector<16x128xi32>
    %53 = arith.shrui %51, %52 : vector<16x128xi32>
    %54 = arith.xori %51, %53 : vector<16x128xi32>
    %c2146121005_i32_12 = arith.constant 2146121005 : i32
    %55 = vector.broadcast %c2146121005_i32_12 : i32 to vector<16x128xi32>
    %56 = arith.muli %54, %55 : vector<16x128xi32>
    %c15_i32_13 = arith.constant 15 : i32
    %57 = vector.broadcast %c15_i32_13 : i32 to vector<16x128xi32>
    %58 = arith.shrui %56, %57 : vector<16x128xi32>
    %59 = arith.xori %56, %58 : vector<16x128xi32>
    %c-2073254261_i32_14 = arith.constant -2073254261 : i32
    %60 = vector.broadcast %c-2073254261_i32_14 : i32 to vector<16x128xi32>
    %61 = arith.muli %59, %60 : vector<16x128xi32>
    %c16_i32_15 = arith.constant 16 : i32
    %62 = vector.broadcast %c16_i32_15 : i32 to vector<16x128xi32>
    %63 = arith.shrui %61, %62 : vector<16x128xi32>
    %64 = arith.xori %61, %63 : vector<16x128xi32>
    %c16_i32_16 = arith.constant 16 : i32
    %65 = vector.broadcast %c16_i32_16 : i32 to vector<16x128xi32>
    %66 = arith.shrui %64, %65 : vector<16x128xi32>
    %67 = arith.xori %64, %66 : vector<16x128xi32>
    %c2146121005_i32_17 = arith.constant 2146121005 : i32
    %68 = vector.broadcast %c2146121005_i32_17 : i32 to vector<16x128xi32>
    %69 = arith.muli %67, %68 : vector<16x128xi32>
    %c15_i32_18 = arith.constant 15 : i32
    %70 = vector.broadcast %c15_i32_18 : i32 to vector<16x128xi32>
    %71 = arith.shrui %69, %70 : vector<16x128xi32>
    %72 = arith.xori %69, %71 : vector<16x128xi32>
    %c-2073254261_i32_19 = arith.constant -2073254261 : i32
    %73 = vector.broadcast %c-2073254261_i32_19 : i32 to vector<16x128xi32>
    %74 = arith.muli %72, %73 : vector<16x128xi32>
    %c16_i32_20 = arith.constant 16 : i32
    %75 = vector.broadcast %c16_i32_20 : i32 to vector<16x128xi32>
    %76 = arith.shrui %74, %75 : vector<16x128xi32>
    %77 = arith.xori %74, %76 : vector<16x128xi32>
    %c1288490189_i32 = arith.constant 1288490189 : i32
    %78 = vector.broadcast %c1288490189_i32 : i32 to vector<16x128xi32>
    %79 = arith.cmpi uge, %77, %78 : vector<16x128xi32>
    %cst_21 = arith.constant 0.476190478 : f32
    %cst_22 = arith.constant 0.000000e+00 : f32
    %80 = vector.broadcast %cst_21 : f32 to vector<16x128xf32>
    %81 = vector.broadcast %cst_22 : f32 to vector<16x128xf32>
    %82 = arith.select %79, %80, %81 : vector<16x128xi1>, vector<16x128xf32>
    %83 = arith.addf %47, %82 : vector<16x128xf32>
    %84 = vector.broadcast %10 : i32 to vector<16x128xi32>
    %85 = arith.xori %8, %84 : vector<16x128xi32>
    %c-1849467071_i32 = arith.constant -1849467071 : i32
    %86 = vector.broadcast %c-1849467071_i32 : i32 to vector<16x128xi32>
    %87 = arith.xori %85, %86 : vector<16x128xi32>
    %c16_i32_23 = arith.constant 16 : i32
    %88 = vector.broadcast %c16_i32_23 : i32 to vector<16x128xi32>
    %89 = arith.shrui %87, %88 : vector<16x128xi32>
    %90 = arith.xori %87, %89 : vector<16x128xi32>
    %c2146121005_i32_24 = arith.constant 2146121005 : i32
    %91 = vector.broadcast %c2146121005_i32_24 : i32 to vector<16x128xi32>
    %92 = arith.muli %90, %91 : vector<16x128xi32>
    %c15_i32_25 = arith.constant 15 : i32
    %93 = vector.broadcast %c15_i32_25 : i32 to vector<16x128xi32>
    %94 = arith.shrui %92, %93 : vector<16x128xi32>
    %95 = arith.xori %92, %94 : vector<16x128xi32>
    %c-2073254261_i32_26 = arith.constant -2073254261 : i32
    %96 = vector.broadcast %c-2073254261_i32_26 : i32 to vector<16x128xi32>
    %97 = arith.muli %95, %96 : vector<16x128xi32>
    %c16_i32_27 = arith.constant 16 : i32
    %98 = vector.broadcast %c16_i32_27 : i32 to vector<16x128xi32>
    %99 = arith.shrui %97, %98 : vector<16x128xi32>
    %100 = arith.xori %97, %99 : vector<16x128xi32>
    %c16_i32_28 = arith.constant 16 : i32
    %101 = vector.broadcast %c16_i32_28 : i32 to vector<16x128xi32>
    %102 = arith.shrui %100, %101 : vector<16x128xi32>
    %103 = arith.xori %100, %102 : vector<16x128xi32>
    %c2146121005_i32_29 = arith.constant 2146121005 : i32
    %104 = vector.broadcast %c2146121005_i32_29 : i32 to vector<16x128xi32>
    %105 = arith.muli %103, %104 : vector<16x128xi32>
    %c15_i32_30 = arith.constant 15 : i32
    %106 = vector.broadcast %c15_i32_30 : i32 to vector<16x128xi32>
    %107 = arith.shrui %105, %106 : vector<16x128xi32>
    %108 = arith.xori %105, %107 : vector<16x128xi32>
    %c-2073254261_i32_31 = arith.constant -2073254261 : i32
    %109 = vector.broadcast %c-2073254261_i32_31 : i32 to vector<16x128xi32>
    %110 = arith.muli %108, %109 : vector<16x128xi32>
    %c16_i32_32 = arith.constant 16 : i32
    %111 = vector.broadcast %c16_i32_32 : i32 to vector<16x128xi32>
    %112 = arith.shrui %110, %111 : vector<16x128xi32>
    %113 = arith.xori %110, %112 : vector<16x128xi32>
    %c-2147483648_i32 = arith.constant -2147483648 : i32
    %114 = vector.broadcast %c-2147483648_i32 : i32 to vector<16x128xi32>
    %115 = arith.cmpi uge, %113, %114 : vector<16x128xi32>
    %cst_33 = arith.constant 0.666666686 : f32
    %cst_34 = arith.constant 0.000000e+00 : f32
    %116 = vector.broadcast %cst_33 : f32 to vector<16x128xf32>
    %117 = vector.broadcast %cst_34 : f32 to vector<16x128xf32>
    %118 = arith.select %115, %116, %117 : vector<16x128xi1>, vector<16x128xf32>
    %119 = arith.addf %83, %118 : vector<16x128xf32>
    %120 = arith.mulf %0, %119 : vector<16x128xf32>
    %c0_35 = arith.constant 0 : index
    %c0_36 = arith.constant 0 : index
    %121 = vector.load %arg3[%c0_35, %c0_36] : memref<16x128xf32, #tpu.memory_space<vmem>>, vector<16x128xf32>
    tpu.vector_store %arg3[%c0_35, %c0_36], %120 {strides = array<i32>} : memref<16x128xf32, #tpu.memory_space<vmem>>, vector<16x128xf32>,
    return
  }
  func.func @transform_0(%arg0: i32) -> i32 {
    %c0_i32 = arith.constant 0 : i32
    %c0_i32_0 = arith.constant 0 : i32
    return %c0_i32 : i32
  }
  func.func @transform_1(%arg0: i32) -> (i32, i32) {
    %c0_i32 = arith.constant 0 : i32
    %c0_i32_0 = arith.constant 0 : i32
    return %arg0, %c0_i32 : i32, i32
  }
  func.func @transform_2(%arg0: i32) -> (i32, i32) {
    %c0_i32 = arith.constant 0 : i32
    %c0_i32_0 = arith.constant 0 : i32
    return %arg0, %c0_i32 : i32, i32
  }
}

</mosaic_0001>

<llo_original>
// kernel: tpu_custom_call.1
$region0: #{tpu_custom_call.1}
  #allocation0 [shape = 'u32[]', space=smem, size = 0x4, offset = 0x4, fixed_abs, tag = 'smem constant byte address 0x4 - core index']
  #allocation1 [shape = 'u32[144,128]{1,0:T(1,128)}', space=vmem, size = 0x12000, scoped, tag = 'internal scratch']
  #allocation2 [shape = 's32[1]{0:T(128)S(6)}', space=smem, size = 0x200, scoped, tag = 'scoped memory for tpu_custom_call.1']
  %s0 = inlined_call_operand.<no memory space> [shape: s32[1], index: 0, kind: input, shape index: {}]
  %s1 = inlined_call_operand.hbm [shape: f32[16,128], index: 1, kind: input, shape index: {}]
  %s2 = inlined_call_operand.hbm [shape: f32[16,128], index: 2, kind: output, shape index: {}]
  %s3 = sld [smem:[#allocation0]]
  $region22: #{tpu_custom_call.1} parent=0
    _
  %s5 = ssub.s32 1, %s3
  %s6 = scalar_select 0, %s5, %s3
  %7 = sst [smem:[#allocation2]] %s0
  $region1: #{tpu_custom_call.1} parent=0
    #allocation3 [shape = 'u8[8192]{0}', space=vmem, size = 0x2000, scoped, tag = 'input window, operand 1, single buffered']
    #allocation4 [shape = 's32[1]{0}', space=sflag, size = 0x4, scoped, tag = 'scoped memory for tpu_custom_call.1']
    #allocation5 [shape = 's32[1]{0}', space=sflag, size = 0x4, scoped, tag = 'scoped memory for tpu_custom_call.1']
    #allocation6 [shape = 'u8[8192]{0}', space=vmem, size = 0x2000, scoped, tag = 'output window, operand 0, single buffered']
    %8 = vsyncpa [#allocation4], 0
    %9 = vsyncpa [#allocation5], 0
    // Predicated region
    $region2: #{tpu_custom_call.1} parent=1 // pred_check
      _
    $region3: #{tpu_custom_call.1} parent=1 // pred_check_branch
      %11 = sbr.rel (0) target = $region5
    $region4: #{tpu_custom_call.1} parent=1 // pred_region
      _
    $region5: #{tpu_custom_call.1} parent=1 // pred_fallthru
      _
    // Predicated region
    $region6: #{tpu_custom_call.1} parent=1 // pred_check
      _
    $region7: #{tpu_custom_call.1} parent=1 // pred_check_branch
      %13 = sbr.rel (0) target = $region9
    $region8: #{tpu_custom_call.1} parent=1 // pred_region
      %s15 = ssub.s32 256, 256
      %16 = vsyncadd [#allocation4], %s15
      %s17 = sshll.u32 [#allocation3], 4
      %s18 = int_to_ptr.vmem [resolvable:$true] %s17
      %23 = dma.hbm_to_vmem [thread:$0]  %s1, 256, %s18, [#allocation4], 128, 128, 8
    $region9: #{tpu_custom_call.1} parent=1 // pred_fallthru
      _
    // Predicated region
    $region10: #{tpu_custom_call.1} parent=1 // pred_check
      _
    $region11: #{tpu_custom_call.1} parent=1 // pred_check_branch
      %25 = sbr.rel (0) target = $region13
    $region12: #{tpu_custom_call.1} parent=1 // pred_region
      %26 = dma.done [#allocation4], 256
    $region13: #{tpu_custom_call.1} parent=1 // pred_fallthru
      _
    %v27 = vld [vmem:[#allocation3] sm:$0xff]
    %v28 = vld [vmem:[#allocation3 + $0x8] sm:$0xff]
    %s29 = smul.u32 0, 16
    %v30 = vlaneseq
    %v31 = vshrl.u32 %v30, 7
    %v32 = vadd.s32 %v31, 8
    %v33 = vlaneseq
    %v34 = vand.u32 %v33, 127
    %v35 = vstv %s29
    %v36 = vadd.s32 %v35, %v31
    %v37 = vadd.s32 %v35, %v32
    %v38 = vmul.u32 %v36, 128
    %v39 = vmul.u32 %v37, 128
    %v40 = vadd.s32 %v38, %v34
    %v41 = vadd.s32 %v39, %v34
    %s42 = sld [smem:[#allocation2]]
    %s43 = smul.u32 %s42, 2654435769
    %v44 = vstv %s43
    %v45 = vxor.u32 %v40, %v44
    %v46 = vxor.u32 %v41, %v44
    %v47 = vxor.u32 %v45, 2246822507
    %v48 = vxor.u32 %v46, 2246822507
    %v49 = vshrl.u32 %v47, 16
    %v50 = vshrl.u32 %v48, 16
    %v51 = vxor.u32 %v47, %v49
    %v52 = vxor.u32 %v48, %v50
    %v53 = vmul.u32 %v51, 2146121005
    %v54 = vmul.u32 %v52, 2146121005
    %v55 = vshrl.u32 %v53, 15
    %v56 = vshrl.u32 %v54, 15
    %v57 = vxor.u32 %v53, %v55
    %v58 = vxor.u32 %v54, %v56
    %v59 = vmul.u32 %v57, 2221713035
    %v60 = vmul.u32 %v58, 2221713035
    %v61 = vshrl.u32 %v59, 16
    %v62 = vshrl.u32 %v60, 16
    %v63 = vxor.u32 %v59, %v61
    %v64 = vxor.u32 %v60, %v62
    %v65 = vshrl.u32 %v63, 16
    %v66 = vshrl.u32 %v64, 16
    %v67 = vxor.u32 %v63, %v65
    %v68 = vxor.u32 %v64, %v66
    %v69 = vmul.u32 %v67, 2146121005
    %v70 = vmul.u32 %v68, 2146121005
    %v71 = vshrl.u32 %v69, 15
    %v72 = vshrl.u32 %v70, 15
    %v73 = vxor.u32 %v69, %v71
    %v74 = vxor.u32 %v70, %v72
    %v75 = vmul.u32 %v73, 2221713035
    %v76 = vmul.u32 %v74, 2221713035
    %v77 = vshrl.u32 %v75, 16
    %v78 = vshrl.u32 %v76, 16
    %v79 = vxor.u32 %v75, %v77
    %v80 = vxor.u32 %v76, %v78
    %vm81 = vcmp.ge.u32.totalorder %v79, 429496730
    %vm82 = vcmp.ge.u32.totalorder %v80, 429496730
    %v83 = vsel %vm81, 0.37037036, 0.0
    %v84 = vsel %vm82, 0.37037036, 0.0
    %v85 = vadd.f32 %v83, 0.0
    %v86 = vadd.f32 %v84, 0.0
    %v87 = vxor.u32 %v45, 198677718
    %v88 = vxor.u32 %v46, 198677718
    %v89 = vshrl.u32 %v87, 16
    %v90 = vshrl.u32 %v88, 16
    %v91 = vxor.u32 %v87, %v89
    %v92 = vxor.u32 %v88, %v90
    %v93 = vmul.u32 %v91, 2146121005
    %v94 = vmul.u32 %v92, 2146121005
    %v95 = vshrl.u32 %v93, 15
    %v96 = vshrl.u32 %v94, 15
    %v97 = vxor.u32 %v93, %v95
    %v98 = vxor.u32 %v94, %v96
    %v99 = vmul.u32 %v97, 2221713035
    %v100 = vmul.u32 %v98, 2221713035
    %v101 = vshrl.u32 %v99, 16
    %v102 = vshrl.u32 %v100, 16
    %v103 = vxor.u32 %v99, %v101
    %v104 = vxor.u32 %v100, %v102
    %v105 = vshrl.u32 %v103, 16
    %v106 = vshrl.u32 %v104, 16
    %v107 = vxor.u32 %v103, %v105
    %v108 = vxor.u32 %v104, %v106
    %v109 = vmul.u32 %v107, 2146121005
    %v110 = vmul.u32 %v108, 2146121005
    %v111 = vshrl.u32 %v109, 15
    %v112 = vshrl.u32 %v110, 15
    %v113 = vxor.u32 %v109, %v111
    %v114 = vxor.u32 %v110, %v112
    %v115 = vmul.u32 %v113, 2221713035
    %v116 = vmul.u32 %v114, 2221713035
    %v117 = vshrl.u32 %v115, 16
    %v118 = vshrl.u32 %v116, 16
    %v119 = vxor.u32 %v115, %v117
    %v120 = vxor.u32 %v116, %v118
    %vm121 = vcmp.ge.u32.totalorder %v119, 1288490189
    %vm122 = vcmp.ge.u32.totalorder %v120, 1288490189
    %v123 = vsel %vm121, 0.47619048, 0.0
    %v124 = vsel %vm122, 0.47619048, 0.0
    %v125 = vadd.f32 %v85, %v123
    %v126 = vadd.f32 %v86, %v124
    %v127 = vxor.u32 %v45, 2445500225
    %v128 = vxor.u32 %v46, 2445500225
    %v129 = vshrl.u32 %v127, 16
    %v130 = vshrl.u32 %v128, 16
    %v131 = vxor.u32 %v127, %v129
    %v132 = vxor.u32 %v128, %v130
    %v133 = vmul.u32 %v131, 2146121005
    %v134 = vmul.u32 %v132, 2146121005
    %v135 = vshrl.u32 %v133, 15
    %v136 = vshrl.u32 %v134, 15
    %v137 = vxor.u32 %v133, %v135
    %v138 = vxor.u32 %v134, %v136
    %v139 = vmul.u32 %v137, 2221713035
    %v140 = vmul.u32 %v138, 2221713035
    %v141 = vshrl.u32 %v139, 16
    %v142 = vshrl.u32 %v140, 16
    %v143 = vxor.u32 %v139, %v141
    %v144 = vxor.u32 %v140, %v142
    %v145 = vshrl.u32 %v143, 16
    %v146 = vshrl.u32 %v144, 16
    %v147 = vxor.u32 %v143, %v145
    %v148 = vxor.u32 %v144, %v146
    %v149 = vmul.u32 %v147, 2146121005
    %v150 = vmul.u32 %v148, 2146121005
    %v151 = vshrl.u32 %v149, 15
    %v152 = vshrl.u32 %v150, 15
    %v153 = vxor.u32 %v149, %v151
    %v154 = vxor.u32 %v150, %v152
    %v155 = vmul.u32 %v153, 2221713035
    %v156 = vmul.u32 %v154, 2221713035
    %v157 = vshrl.u32 %v155, 16
    %v158 = vshrl.u32 %v156, 16
    %v159 = vxor.u32 %v155, %v157
    %v160 = vxor.u32 %v156, %v158
    %vm161 = vcmp.ge.u32.totalorder %v159, 2147483648
    %vm162 = vcmp.ge.u32.totalorder %v160, 2147483648
    %v163 = vsel %vm161, 0.6666667, 0.0
    %v164 = vsel %vm162, 0.6666667, 0.0
    %v165 = vadd.f32 %v125, %v163
    %v166 = vadd.f32 %v126, %v164
    %v167 = vmul.f32 %v27, %v165
    %v168 = vmul.f32 %v28, %v166
    %169 = vst [vmem:[#allocation6] sm:$0xff] %v167
    %170 = vst [vmem:[#allocation6 + $0x8] sm:$0xff] %v168
    // Predicated region
    $region14: #{tpu_custom_call.1} parent=1 // pred_check
      _
    $region15: #{tpu_custom_call.1} parent=1 // pred_check_branch
      %172 = sbr.rel (0) target = $region17
    $region16: #{tpu_custom_call.1} parent=1 // pred_region
      %s174 = ssub.s32 256, 256
      %175 = vsyncadd [#allocation5], %s174
      %s176 = sshll.u32 [#allocation6], 4
      %s177 = int_to_ptr.vmem [resolvable:$true] %s176
      %182 = dma.vmem_to_hbm [thread:$0]  %s177, 256, %s2, [#allocation5], 128, 128, 8
    $region17: #{tpu_custom_call.1} parent=1 // pred_fallthru
      _
    // Predicated region
    $region18: #{tpu_custom_call.1} parent=1 // pred_check
      _
    $region19: #{tpu_custom_call.1} parent=1 // pred_check_branch
      %184 = sbr.rel (0) target = $region21
    $region20: #{tpu_custom_call.1} parent=1 // pred_region
      %185 = dma.done [#allocation5], 256
    $region21: #{tpu_custom_call.1} parent=1 // pred_fallthru
      _
    %186 = vsyncpa [#allocation4], 1
    %187 = vsyncpa [#allocation5], 1

</llo_original>
